<compile_context>
chip_gen: v7x
topology: tpu7x:2x2x1
jax: 0.10.0
libtpu: 0.0.40
codegen_flags: <defaults>
</compile_context>

<pallas_src>
import functools

import jax
import jax.numpy as jnp
from jax.experimental import pallas as pl
from jax.experimental.pallas import tpu as pltpu


LANE = 512      # lane-dense last dim: multiple of 128
TB_MAX = 512    # rows per tile: 4 inputs * 2 bufs * 512*512*4B = 8 MiB VMEM


def _mtl_loss_kernel(log_vars_ref, pred_gend_ref, tar_gend_ref,
                     pred_age_ref, tar_age_ref, out_ref, acc_ref,
                     *, inv_n0, inv_n1):
    i = pl.program_id(0)

    @pl.when(i == 0)
    def _init():
        acc_ref[0] = jnp.float32(0.0)
        acc_ref[1] = jnp.float32(0.0)

    # --- BCE with logits, partial sum (stable form, matches
    #     torch.nn.functional.binary_cross_entropy_with_logits) ---
    x = pred_gend_ref[...].astype(jnp.float32)
    y = tar_gend_ref[...].astype(jnp.float32)
    bce = jnp.maximum(x, 0.0) - x * y + jnp.log1p(jnp.exp(-jnp.abs(x)))
    acc_ref[0] += jnp.sum(bce)

    # --- MSE, partial sum ---
    d = pred_age_ref[...].astype(jnp.float32) - tar_age_ref[...].astype(jnp.float32)
    acc_ref[1] += jnp.sum(d * d)

    # --- finalize: mean + uncertainty weighting, once ---
    @pl.when(i == pl.num_programs(0) - 1)
    def _finalize():
        loss0 = acc_ref[0] * jnp.float32(inv_n0)
        loss1 = acc_ref[1] * jnp.float32(inv_n1)
        lv0 = log_vars_ref[0]
        lv1 = log_vars_ref[1]
        out_ref[0, 0] = (jnp.exp(-lv0) * loss0 + lv0
                         + jnp.exp(-lv1) * loss1 + lv1)


def _pad_to_slab(x, rows_padded, lane, pad_value):
    """Flatten, pad to rows_padded*lane with pad_value, reshape lane-dense."""
    flat = jnp.ravel(x)
    total = rows_padded * lane
    flat = jnp.pad(flat, (0, total - flat.size),
                   constant_values=jnp.asarray(pad_value, flat.dtype))
    return flat.reshape(rows_padded, lane)


def mtl_loss(log_vars, pred_age, pred_gend, tar_gend, tar_age):
    """Pallas implementation of MTL_Loss.forward. Returns a scalar."""
    assert pred_gend.size == tar_gend.size
    assert pred_age.size == tar_age.size
    n0 = pred_gend.size   # gender-loss element count
    n1 = pred_age.size    # age-loss element count

    rows = max(pl.cdiv(n0, LANE), pl.cdiv(n1, LANE))
    # Rows per tile: multiple of 8 (sublane), capped so double-buffered VMEM
    # use stays well inside every generation's scoped limit.
    tb = min(TB_MAX, ((rows + 7) // 8) * 8)
    num_tiles = pl.cdiv(rows, tb)
    rows_padded = num_tiles * tb

    # Padding chosen so padded elements contribute exactly 0 to each loss:
    #   bce(x=-1e9, y=0) = 0 ;  (0 - 0)^2 = 0
    pg = _pad_to_slab(pred_gend, rows_padded, LANE, -1e9)
    tg = _pad_to_slab(tar_gend, rows_padded, LANE, 0.0)
    pa = _pad_to_slab(pred_age, rows_padded, LANE, 0.0)
    ta = _pad_to_slab(tar_age, rows_padded, LANE, 0.0)

    kernel = functools.partial(_mtl_loss_kernel,
                               inv_n0=1.0 / n0, inv_n1=1.0 / n1)

    tile_spec = pl.BlockSpec((tb, LANE), lambda i, lv: (i, 0))

    out = pl.pallas_call(
        kernel,
        out_shape=jax.ShapeDtypeStruct((1, 1), jnp.float32),
        grid_spec=pltpu.PrefetchScalarGridSpec(
            num_scalar_prefetch=1,            # log_vars -> SMEM before grid
            grid=(num_tiles,),
            in_specs=[tile_spec, tile_spec, tile_spec, tile_spec],
            out_specs=pl.BlockSpec(memory_space=pltpu.SMEM),
            scratch_shapes=[pltpu.SMEM((2,), jnp.float32)],
        ),
        compiler_params=pltpu.CompilerParams(
            dimension_semantics=("arbitrary",),   # reduction axis
            vmem_limit_bytes=32 * 1024 * 1024,    # explicit: safe on v5e..v7x
        ),
    )(log_vars, pg, tg, pa, ta)
    return out[0, 0]


def mtl_loss_ref(log_vars, pred_age, pred_gend, tar_gend, tar_age):
    """Pure-JAX reference for verification."""
    x, y = pred_gend.astype(jnp.float32), tar_gend.astype(jnp.float32)
    loss0 = jnp.mean(jnp.maximum(x, 0.0) - x * y + jnp.log1p(jnp.exp(-jnp.abs(x))))
    loss1 = jnp.mean((pred_age.astype(jnp.float32) - tar_age.astype(jnp.float32)) ** 2)
    return (jnp.exp(-log_vars[0]) * loss0 + log_vars[0]
            + jnp.exp(-log_vars[1]) * loss1 + log_vars[1])


if __name__ == "__main__":
    task_num = 2
    batch, feat = 8, 128   # small shapes; kernel itself scales to any size

    key = jax.random.PRNGKey(0)
    k1, k2, k3, k4 = jax.random.split(key, 4)
    pred_age = jax.random.normal(k1, (batch, feat), dtype=jnp.float32)
    pred_gend = jax.random.normal(k2, (batch, feat), dtype=jnp.float32)
    tar_gend = (jax.random.uniform(k3, (batch, feat)) > 0.5).astype(jnp.float32)
    tar_age = jax.random.normal(k4, (batch, feat), dtype=jnp.float32)

    # nn.Parameter(torch.zeros(task_num)) -> deterministic zero init
    log_vars = jnp.zeros((task_num,), dtype=jnp.float32)

    out = mtl_loss(log_vars, pred_age, pred_gend, tar_gend, tar_age)
    jax.block_until_ready(out)

    ref = mtl_loss_ref(log_vars, pred_age, pred_gend, tar_gend, tar_age)
    assert jnp.allclose(out, ref, atol=1e-5, rtol=1e-5), (out, ref)

    print("KERNEL_OK")
</pallas_src>

<mosaic_0001>
module attributes {stable_mosaic.version = 11 : i64} {
  func.func @_mtl_loss_kernel(%arg0: i32, %arg1: memref<2xf32, #tpu.memory_space<smem>>, %arg2: memref<8x512xf32, #tpu.memory_space<vmem>>, %arg3: memref<8x512xf32, #tpu.memory_space<vmem>>, %arg4: memref<8x512xf32, #tpu.memory_space<vmem>>, %arg5: memref<8x512xf32, #tpu.memory_space<vmem>>, %arg6: memref<1x1xf32, #tpu.memory_space<smem>>, %arg7: memref<2xf32, #tpu.memory_space<smem>>) attributes {dimension_semantics = [#tpu.dimension_semantics<arbitrary>], iteration_bounds = array<i64: 1>, scalar_prefetch = 1 : i64, scratch_operands = 1 : i64, tpu.core_type = #tpu.core_type<tc>, window_params = [{transform_indices = @transform_0, window_bounds = array<i64: 8, 512>}, {transform_indices = @transform_1, window_bounds = array<i64: 8, 512>}, {transform_indices = @transform_2, window_bounds = array<i64: 8, 512>}, {transform_indices = @transform_3, window_bounds = array<i64: 8, 512>}, {transform_indices = @transform_4, window_bounds = array<i64: 1, 1>}]} {
    %c0_i32 = arith.constant 0 : i32
    %0 = arith.cmpi eq, %arg0, %c0_i32 : i32
    %1 = arith.extui %0 : i1 to i32
    %c0_i32_0 = arith.constant 0 : i32
    %2 = arith.cmpi ne, %1, %c0_i32_0 : i32
    scf.if %2 {
      %cst_16 = arith.constant 0.000000e+00 : f32
      %c0_17 = arith.constant 0 : index
      %36 = memref.load %arg7[%c0_17] : memref<2xf32, #tpu.memory_space<smem>>
      memref.store %cst_16, %arg7[%c0_17] : memref<2xf32, #tpu.memory_space<smem>>
      %cst_18 = arith.constant 0.000000e+00 : f32
      %c1_19 = arith.constant 1 : index
      %37 = memref.load %arg7[%c1_19] : memref<2xf32, #tpu.memory_space<smem>>
      memref.store %cst_18, %arg7[%c1_19] : memref<2xf32, #tpu.memory_space<smem>>
    } else {
    }
    %c0 = arith.constant 0 : index
    %c0_1 = arith.constant 0 : index
    %3 = vector.load %arg2[%c0, %c0_1] : memref<8x512xf32, #tpu.memory_space<vmem>>, vector<8x512xf32>
    %c0_2 = arith.constant 0 : index
    %c0_3 = arith.constant 0 : index
    %4 = vector.load %arg3[%c0_2, %c0_3] : memref<8x512xf32, #tpu.memory_space<vmem>>, vector<8x512xf32>
    %cst = arith.constant 0.000000e+00 : f32
    %5 = vector.broadcast %cst : f32 to vector<8x512xf32>
    %6 = arith.maximumf %3, %5 : vector<8x512xf32>
    %7 = arith.mulf %3, %4 : vector<8x512xf32>
    %8 = arith.subf %6, %7 : vector<8x512xf32>
    %9 = math.absf %3 : vector<8x512xf32>
    %cst_4 = arith.constant 0.000000e+00 : f32
    %10 = vector.broadcast %cst_4 : f32 to vector<8x512xf32>
    %11 = arith.subf %10, %9 : vector<8x512xf32>
    %12 = math.exp %11 : vector<8x512xf32>
    %13 = math.log1p %12 : vector<8x512xf32>
    %14 = arith.addf %8, %13 : vector<8x512xf32>
    %c0_5 = arith.constant 0 : index
    %15 = memref.load %arg7[%c0_5] : memref<2xf32, #tpu.memory_space<smem>>
    %16 = vector.shape_cast %14 : vector<8x512xf32> to vector<1x8x512xf32>
    %cst_6 = arith.constant dense<0.000000e+00> : vector<1xf32>
    %17 = vector.multi_reduction <add>, %16, %cst_6 [1, 2] : vector<1x8x512xf32> to vector<1xf32>
    %18 = vector.shape_cast %17 : vector<1xf32> to vector<1x1x1xf32>
    %19 = vector.extract %18[0, 0, 0] : f32 from vector<1x1x1xf32>
    %20 = arith.addf %15, %19 : f32
    %c0_7 = arith.constant 0 : index
    %21 = memref.load %arg7[%c0_7] : memref<2xf32, #tpu.memory_space<smem>>
    memref.store %20, %arg7[%c0_7] : memref<2xf32, #tpu.memory_space<smem>>
    %c0_8 = arith.constant 0 : index
    %c0_9 = arith.constant 0 : index
    %22 = vector.load %arg4[%c0_8, %c0_9] : memref<8x512xf32, #tpu.memory_space<vmem>>, vector<8x512xf32>
    %c0_10 = arith.constant 0 : index
    %c0_11 = arith.constant 0 : index
    %23 = vector.load %arg5[%c0_10, %c0_11] : memref<8x512xf32, #tpu.memory_space<vmem>>, vector<8x512xf32>
    %24 = arith.subf %22, %23 : vector<8x512xf32>
    %c1 = arith.constant 1 : index
    %25 = memref.load %arg7[%c1] : memref<2xf32, #tpu.memory_space<smem>>
    %26 = arith.mulf %24, %24 : vector<8x512xf32>
    %27 = vector.shape_cast %26 : vector<8x512xf32> to vector<1x8x512xf32>
    %cst_12 = arith.constant dense<0.000000e+00> : vector<1xf32>
    %28 = vector.multi_reduction <add>, %27, %cst_12 [1, 2] : vector<1x8x512xf32> to vector<1xf32>
    %29 = vector.shape_cast %28 : vector<1xf32> to vector<1x1x1xf32>
    %30 = vector.extract %29[0, 0, 0] : f32 from vector<1x1x1xf32>
    %31 = arith.addf %25, %30 : f32
    %c1_13 = arith.constant 1 : index
    %32 = memref.load %arg7[%c1_13] : memref<2xf32, #tpu.memory_space<smem>>
    memref.store %31, %arg7[%c1_13] : memref<2xf32, #tpu.memory_space<smem>>
    %c0_i32_14 = arith.constant 0 : i32
    %33 = arith.cmpi eq, %arg0, %c0_i32_14 : i32
    %34 = arith.extui %33 : i1 to i32
    %c0_i32_15 = arith.constant 0 : i32
    %35 = arith.cmpi ne, %34, %c0_i32_15 : i32
    scf.if %35 {
      %c0_16 = arith.constant 0 : index
      %36 = memref.load %arg7[%c0_16] : memref<2xf32, #tpu.memory_space<smem>>
      %cst_17 = arith.constant 9.765625E-4 : f32
      %37 = arith.mulf %36, %cst_17 : f32
      %c1_18 = arith.constant 1 : index
      %38 = memref.load %arg7[%c1_18] : memref<2xf32, #tpu.memory_space<smem>>
      %cst_19 = arith.constant 9.765625E-4 : f32
      %39 = arith.mulf %38, %cst_19 : f32
      %c0_20 = arith.constant 0 : index
      %40 = memref.load %arg1[%c0_20] : memref<2xf32, #tpu.memory_space<smem>>
      %c1_21 = arith.constant 1 : index
      %41 = memref.load %arg1[%c1_21] : memref<2xf32, #tpu.memory_space<smem>>
      %cst_22 = arith.constant 0.000000e+00 : f32
      %42 = arith.subf %cst_22, %40 : f32
      %43 = math.exp %42 : f32
      %44 = arith.mulf %43, %37 : f32
      %45 = arith.addf %44, %40 : f32
      %cst_23 = arith.constant 0.000000e+00 : f32
      %46 = arith.subf %cst_23, %41 : f32
      %47 = math.exp %46 : f32
      %48 = arith.mulf %47, %39 : f32
      %49 = arith.addf %45, %48 : f32
      %50 = arith.addf %49, %41 : f32
      %c0_24 = arith.constant 0 : index
      %c0_25 = arith.constant 0 : index
      %51 = memref.load %arg6[%c0_24, %c0_25] : memref<1x1xf32, #tpu.memory_space<smem>>
      memref.store %50, %arg6[%c0_24, %c0_25] : memref<1x1xf32, #tpu.memory_space<smem>>
    } else {
    }
    return
  }
  func.func @transform_0(%arg0: i32, %arg1: memref<2xf32, #tpu.memory_space<smem>>) -> (i32, i32) {
    %c0_i32 = arith.constant 0 : i32
    %c0_i32_0 = arith.constant 0 : i32
    return %arg0, %c0_i32 : i32, i32
  }
  func.func @transform_1(%arg0: i32, %arg1: memref<2xf32, #tpu.memory_space<smem>>) -> (i32, i32) {
    %c0_i32 = arith.constant 0 : i32
    %c0_i32_0 = arith.constant 0 : i32
    return %arg0, %c0_i32 : i32, i32
  }
  func.func @transform_2(%arg0: i32, %arg1: memref<2xf32, #tpu.memory_space<smem>>) -> (i32, i32) {
    %c0_i32 = arith.constant 0 : i32
    %c0_i32_0 = arith.constant 0 : i32
    return %arg0, %c0_i32 : i32, i32
  }
  func.func @transform_3(%arg0: i32, %arg1: memref<2xf32, #tpu.memory_space<smem>>) -> (i32, i32) {
    %c0_i32 = arith.constant 0 : i32
    %c0_i32_0 = arith.constant 0 : i32
    return %arg0, %c0_i32 : i32, i32
  }
  func.func @transform_4(%arg0: i32, %arg1: memref<2xf32, #tpu.memory_space<smem>>) -> (i32, i32) {
    %c0_i32 = arith.constant 0 : i32
    %c0_i32_0 = arith.constant 0 : i32
    %c0_i32_1 = arith.constant 0 : i32
    return %c0_i32, %c0_i32_0 : i32, i32
  }
}

</mosaic_0001>

<llo_original>
// kernel: tpu_custom_call.1
$region0: #{tpu_custom_call.1}
  #allocation0 [shape = 'u32[]', space=smem, size = 0x4, offset = 0x4, fixed_abs, tag = 'smem constant byte address 0x4 - core index']
  #allocation1 [shape = 'u32[144,128]{1,0:T(1,128)}', space=vmem, size = 0x12000, scoped, tag = 'internal scratch']
  #allocation2 [shape = 'f32[2]{0:T(128)}', space=smem, size = 0x200, scoped, tag = 'scratch operand']
  #allocation3 [shape = 's32[1]{0}', space=sflag, size = 0x4, scoped, tag = 'scoped memory for tpu_custom_call.1']
  #allocation4 [shape = 'u8[512]{0}', space=smem, size = 0x200, scoped, tag = 'prefetched SMEM operand 0']
  %s0 = inlined_call_operand.hbm [shape: f32[2], index: 0, kind: input, shape index: {}]
  %s1 = inlined_call_operand.hbm [shape: f32[8,512], index: 1, kind: input, shape index: {}]
  %s2 = inlined_call_operand.hbm [shape: f32[8,512], index: 2, kind: input, shape index: {}]
  %s3 = inlined_call_operand.hbm [shape: f32[8,512], index: 3, kind: input, shape index: {}]
  %s4 = inlined_call_operand.hbm [shape: f32[8,512], index: 4, kind: input, shape index: {}]
  %s5 = inlined_call_operand.hbm [shape: f32[1,1], index: 5, kind: output, shape index: {}]
  %s6 = sld [smem:[#allocation0]]
  $region50: #{tpu_custom_call.1} parent=0
    _
  %s8 = ssub.s32 1, %s6
  %s9 = scalar_select 0, %s8, %s6
  %11 = dma.hbm_to_smem %s0, 16, [#allocation4], [#allocation3]
  %12 = dma.done [#allocation3], 16
  %13 = sfence
  $region1: #{tpu_custom_call.1} parent=0
    #allocation5 [shape = 'u8[16384]{0}', space=vmem, size = 0x4000, scoped, tag = 'input window, operand 1, single buffered']
    #allocation6 [shape = 's32[1]{0}', space=sflag, size = 0x4, scoped, tag = 'scoped memory for tpu_custom_call.1']
    #allocation7 [shape = 's32[1]{0}', space=sflag, size = 0x4, scoped, tag = 'scoped memory for tpu_custom_call.1']
    #allocation8 [shape = 'u8[16384]{0}', space=vmem, size = 0x4000, scoped, tag = 'input window, operand 2, single buffered']
    #allocation9 [shape = 's32[1]{0}', space=sflag, size = 0x4, scoped, tag = 'scoped memory for tpu_custom_call.1']
    #allocation10 [shape = 'u8[16384]{0}', space=vmem, size = 0x4000, scoped, tag = 'input window, operand 3, single buffered']
    #allocation11 [shape = 'u8[16384]{0}', space=vmem, size = 0x4000, scoped, tag = 'input window, operand 4, single buffered']
    #allocation12 [shape = 's32[1]{0}', space=sflag, size = 0x4, scoped, tag = 'scoped memory for tpu_custom_call.1']
    #allocation13 [shape = 'u8[512]{0}', space=smem, size = 0x200, scoped, tag = 'output window, operand 0, single buffered']
    %14 = vsyncpa [#allocation6], 0
    %15 = vsyncpa [#allocation9], 0
    %16 = vsyncpa [#allocation12], 0
    %17 = vsyncpa [#allocation7], 0
    // Predicated region
    $region2: #{tpu_custom_call.1} parent=1 // pred_check
      _
    $region3: #{tpu_custom_call.1} parent=1 // pred_check_branch
      %19 = sbr.rel (0) target = $region5
    $region4: #{tpu_custom_call.1} parent=1 // pred_region
      %s21 = ssub.s32 512, 512
      %22 = vsyncadd [#allocation6], %s21
      %s24 = sshll.u32 [#allocation5], 4
      %s25 = int_to_ptr.vmem [resolvable:$true] %s24
      %27 = dma.hbm_to_vmem [thread:$0]  %s1, 512, %s25, [#allocation6]
    $region5: #{tpu_custom_call.1} parent=1 // pred_fallthru
      _
    // Predicated region
    $region6: #{tpu_custom_call.1} parent=1 // pred_check
      _
    $region7: #{tpu_custom_call.1} parent=1 // pred_check_branch
      %29 = sbr.rel (0) target = $region9
    $region8: #{tpu_custom_call.1} parent=1 // pred_region
      %s31 = ssub.s32 512, 512
      %32 = vsyncadd [#allocation9], %s31
      %s34 = sshll.u32 [#allocation8], 4
      %s35 = int_to_ptr.vmem [resolvable:$true] %s34
      %37 = dma.hbm_to_vmem [thread:$0]  %s2, 512, %s35, [#allocation9]
    $region9: #{tpu_custom_call.1} parent=1 // pred_fallthru
      _
    // Predicated region
    $region10: #{tpu_custom_call.1} parent=1 // pred_check
      _
    $region11: #{tpu_custom_call.1} parent=1 // pred_check_branch
      %39 = sbr.rel (0) target = $region13
    $region12: #{tpu_custom_call.1} parent=1 // pred_region
      %s41 = ssub.s32 512, 512
      %42 = vsyncadd [#allocation9], %s41
      %s44 = sshll.u32 [#allocation10], 4
      %s45 = int_to_ptr.vmem [resolvable:$true] %s44
      %47 = dma.hbm_to_vmem [thread:$0]  %s3, 512, %s45, [#allocation9]
    $region13: #{tpu_custom_call.1} parent=1 // pred_fallthru
      _
    // Predicated region
    $region14: #{tpu_custom_call.1} parent=1 // pred_check
      _
    $region15: #{tpu_custom_call.1} parent=1 // pred_check_branch
      %49 = sbr.rel (0) target = $region17
    $region16: #{tpu_custom_call.1} parent=1 // pred_region
      %s51 = ssub.s32 512, 512
      %52 = vsyncadd [#allocation12], %s51
      %s54 = sshll.u32 [#allocation11], 4
      %s55 = int_to_ptr.vmem [resolvable:$true] %s54
      %57 = dma.hbm_to_vmem [thread:$0]  %s4, 512, %s55, [#allocation12]
    $region17: #{tpu_custom_call.1} parent=1 // pred_fallthru
      _
    // Predicated region
    $region18: #{tpu_custom_call.1} parent=1 // pred_check
      _
    $region19: #{tpu_custom_call.1} parent=1 // pred_check_branch
      %59 = sbr.rel (0) target = $region21
    $region20: #{tpu_custom_call.1} parent=1 // pred_region
      %60 = dma.done [#allocation6], 512
    $region21: #{tpu_custom_call.1} parent=1 // pred_fallthru
      _
    // Predicated region
    $region22: #{tpu_custom_call.1} parent=1 // pred_check
      _
    $region23: #{tpu_custom_call.1} parent=1 // pred_check_branch
      %62 = sbr.rel (0) target = $region25
    $region24: #{tpu_custom_call.1} parent=1 // pred_region
      %63 = dma.done [#allocation9], 512
    $region25: #{tpu_custom_call.1} parent=1 // pred_fallthru
      _
    // Predicated region
    $region26: #{tpu_custom_call.1} parent=1 // pred_check
      _
    $region27: #{tpu_custom_call.1} parent=1 // pred_check_branch
      %65 = sbr.rel (0) target = $region29
    $region28: #{tpu_custom_call.1} parent=1 // pred_region
      %66 = dma.done [#allocation9], 512
    $region29: #{tpu_custom_call.1} parent=1 // pred_fallthru
      _
    // Predicated region
    $region30: #{tpu_custom_call.1} parent=1 // pred_check
      _
    $region31: #{tpu_custom_call.1} parent=1 // pred_check_branch
      %68 = sbr.rel (0) target = $region33
    $region32: #{tpu_custom_call.1} parent=1 // pred_region
      %69 = dma.done [#allocation12], 512
    $region33: #{tpu_custom_call.1} parent=1 // pred_fallthru
      _
    %p70 = scmp.eq.s32.totalorder 0, 0
    // Predicated region
    $region34: #{tpu_custom_call.1} parent=1 // pred_check
      %p71 = pneg %p70
    $region35: #{tpu_custom_call.1} parent=1 // pred_check_branch
      %73 = sbr.rel (%p71) target = $region37
    $region36: #{tpu_custom_call.1} parent=1 // pred_region
      %s74 = scalar_lea.smem [#allocation2], 0
      %75 = sst [smem:[%s74]] 0.0
      %s76 = scalar_lea.smem [#allocation2], 1
      %77 = sst [smem:[%s76]] 0.0
    $region37: #{tpu_custom_call.1} parent=1 // pred_fallthru
      _
    %v78 = vld [vmem:[#allocation5] sm:$0xff]
    %v79 = vld [vmem:[#allocation5 + $0x8] sm:$0xff]
    %v80 = vld [vmem:[#allocation5 + $0x10] sm:$0xff]
    %v81 = vld [vmem:[#allocation5 + $0x18] sm:$0xff]
    %v82 = vld [vmem:[#allocation8] sm:$0xff]
    %v83 = vld [vmem:[#allocation8 + $0x8] sm:$0xff]
    %v84 = vld [vmem:[#allocation8 + $0x10] sm:$0xff]
    %v85 = vld [vmem:[#allocation8 + $0x18] sm:$0xff]
    %v86 = vmax.f32 %v78, 0.0
    %v87 = vmax.f32 %v79, 0.0
    %v88 = vmax.f32 %v80, 0.0
    %v89 = vmax.f32 %v81, 0.0
    %v90 = vmul.f32 %v78, %v82
    %v91 = vmul.f32 %v79, %v83
    %v92 = vmul.f32 %v80, %v84
    %v93 = vmul.f32 %v81, %v85
    %v94 = vsub.f32 %v86, %v90
    %v95 = vsub.f32 %v87, %v91
    %v96 = vsub.f32 %v88, %v92
    %v97 = vsub.f32 %v89, %v93
    %v98 = vand.u32 2147483647, %v78
    %v99 = vand.u32 2147483647, %v79
    %v100 = vand.u32 2147483647, %v80
    %v101 = vand.u32 2147483647, %v81
    %v102 = vsub.f32 0.0, %v98
    %v103 = vsub.f32 0.0, %v99
    %v104 = vsub.f32 0.0, %v100
    %v105 = vsub.f32 0.0, %v101
    %v106 = vmul.f32 %v102, 1.442695
    %v107 = vpow.pop %v106
    %v108 = vmul.f32 %v103, 1.442695
    %v109 = vpow.pop %v108
    %v110 = vmul.f32 %v104, 1.442695
    %v111 = vpow.pop %v110
    %v112 = vmul.f32 %v105, 1.442695
    %v113 = vpow.pop %v112
    %v114 = vadd.f32 %v107, 1.0
    %v115 = vlog2.pop %v114
    %v116 = vmul.f32 %v115, 0.6931472
    %v117 = vmul.f32 -0.5, %v107
    %v118 = vadd.f32 %v117, 1.0
    %v119 = vmul.f32 %v118, %v107
    %v120 = vand.u32 2147483647, %v107
    %vm121 = vcmp.lt.f32.partialorder %v120, 0.0004427343
    %v122 = vsel %vm121, %v119, %v116
    %v123 = vadd.f32 %v109, 1.0
    %v124 = vlog2.pop %v123
    %v125 = vmul.f32 %v124, 0.6931472
    %v126 = vmul.f32 -0.5, %v109
    %v127 = vadd.f32 %v126, 1.0
    %v128 = vmul.f32 %v127, %v109
    %v129 = vand.u32 2147483647, %v109
    %vm130 = vcmp.lt.f32.partialorder %v129, 0.0004427343
    %v131 = vsel %vm130, %v128, %v125
    %v132 = vadd.f32 %v111, 1.0
    %v133 = vlog2.pop %v132
    %v134 = vmul.f32 %v133, 0.6931472
    %v135 = vmul.f32 -0.5, %v111
    %v136 = vadd.f32 %v135, 1.0
    %v137 = vmul.f32 %v136, %v111
    %v138 = vand.u32 2147483647, %v111
    %vm139 = vcmp.lt.f32.partialorder %v138, 0.0004427343
    %v140 = vsel %vm139, %v137, %v134
    %v141 = vadd.f32 %v113, 1.0
    %v142 = vlog2.pop %v141
    %v143 = vmul.f32 %v142, 0.6931472
    %v144 = vmul.f32 -0.5, %v113
    %v145 = vadd.f32 %v144, 1.0
    %v146 = vmul.f32 %v145, %v113
    %v147 = vand.u32 2147483647, %v113
    %vm148 = vcmp.lt.f32.partialorder %v147, 0.0004427343
    %v149 = vsel %vm148, %v146, %v143
    %v150 = vadd.f32 %v94, %v122
    %v151 = vadd.f32 %v95, %v131
    %v152 = vadd.f32 %v96, %v140
    %v153 = vadd.f32 %v97, %v149
    %s154 = sld [smem:[#allocation2]]
    %v155 = vadd.f32 %v150, %v151
    %v156 = vadd.f32 %v155, %v152
    %v157 = vadd.f32 %v156, %v153
    %158 = vadd.xlane.f32.xlu0 %v157
    %v159 = vpop.xlane.xlu0 %158
    %v160 = vrot.slane %v159, 4
    %v161 = vadd.f32 %v159, %v160
    %v162 = vrot.slane %v161, 2
    %v163 = vadd.f32 %v161, %v162
    %v164 = vrot.slane %v163, 1
    %v165 = vadd.f32 %v163, %v164
    %s166 = vtos %v165
    %s167 = sadd.f32 %s154, %s166
    %s168 = scalar_lea.smem [#allocation2], 0
    %169 = sst [smem:[%s168]] %s167
    %v170 = vld [vmem:[#allocation10] sm:$0xff]
    %v171 = vld [vmem:[#allocation10 + $0x8] sm:$0xff]
    %v172 = vld [vmem:[#allocation10 + $0x10] sm:$0xff]
    %v173 = vld [vmem:[#allocation10 + $0x18] sm:$0xff]
    %v174 = vld [vmem:[#allocation11] sm:$0xff]
    %v175 = vld [vmem:[#allocation11 + $0x8] sm:$0xff]
    %v176 = vld [vmem:[#allocation11 + $0x10] sm:$0xff]
    %v177 = vld [vmem:[#allocation11 + $0x18] sm:$0xff]
    %v178 = vsub.f32 %v170, %v174
    %v179 = vsub.f32 %v171, %v175
    %v180 = vsub.f32 %v172, %v176
    %v181 = vsub.f32 %v173, %v177
    %s182 = sld [smem:[#allocation2 + $0x1]]
    %v183 = vmul.f32 %v178, %v178
    %v184 = vmul.f32 %v179, %v179
    %v185 = vmul.f32 %v180, %v180
    %v186 = vmul.f32 %v181, %v181
    %v187 = vadd.f32 %v183, %v184
    %v188 = vadd.f32 %v187, %v185
    %v189 = vadd.f32 %v188, %v186
    %190 = vadd.xlane.f32.xlu0 %v189
    %v191 = vpop.xlane.xlu0 %190
    %v192 = vrot.slane %v191, 4
    %v193 = vadd.f32 %v191, %v192
    %v194 = vrot.slane %v193, 2
    %v195 = vadd.f32 %v193, %v194
    %v196 = vrot.slane %v195, 1
    %v197 = vadd.f32 %v195, %v196
    %s198 = vtos %v197
    %s199 = sadd.f32 %s182, %s198
    %s200 = scalar_lea.smem [#allocation2], 1
    %201 = sst [smem:[%s200]] %s199
    // Predicated region
    $region38: #{tpu_custom_call.1} parent=1 // pred_check
      %p202 = pneg %p70
    $region39: #{tpu_custom_call.1} parent=1 // pred_check_branch
      %204 = sbr.rel (%p202) target = $region41
    $region40: #{tpu_custom_call.1} parent=1 // pred_region
      %s205 = sld [smem:[#allocation2]]
      %s206 = smul.f32 %s205, 0.0009765625
      %s207 = sld [smem:[#allocation2 + $0x1]]
      %s208 = smul.f32 %s207, 0.0009765625
      %s209 = sld [smem:[#allocation4]]
      %s210 = sld [smem:[#allocation4 + $0x1]]
      %s211 = ssub.f32 0.0, %s209
      %v212 = vstv %s211
      %v213 = vmul.f32 %v212, 1.442695
      %v214 = vpow.pop %v213
      %s215 = vtos %v214
      %s216 = smul.f32 %s215, %s206
      %s217 = sadd.f32 %s216, %s209
      %s218 = ssub.f32 0.0, %s210
      %v219 = vstv %s218
      %v220 = vmul.f32 %v219, 1.442695
      %v221 = vpow.pop %v220
      %s222 = vtos %v221
      %s223 = smul.f32 %s222, %s208
      %s224 = sadd.f32 %s217, %s223
      %s225 = sadd.f32 %s224, %s210
      %s226 = scalar_lea.smem [#allocation13], 0
      %227 = sst [smem:[%s226]] %s225
    $region41: #{tpu_custom_call.1} parent=1 // pred_fallthru
      _
    // Predicated region
    $region42: #{tpu_custom_call.1} parent=1 // pred_check
      _
    $region43: #{tpu_custom_call.1} parent=1 // pred_check_branch
      %229 = sbr.rel (0) target = $region45
    $region44: #{tpu_custom_call.1} parent=1 // pred_region
      %s231 = ssub.s32 16, 16
      %232 = vsyncadd [#allocation7], %s231
      %235 = dma.smem_to_hbm [#allocation13], 16, %s5, [#allocation7]
    $region45: #{tpu_custom_call.1} parent=1 // pred_fallthru
      _
    // Predicated region
    $region46: #{tpu_custom_call.1} parent=1 // pred_check
      _
    $region47: #{tpu_custom_call.1} parent=1 // pred_check_branch
      %237 = sbr.rel (0) target = $region49
    $region48: #{tpu_custom_call.1} parent=1 // pred_region
      %238 = dma.done [#allocation7], 16
    $region49: #{tpu_custom_call.1} parent=1 // pred_fallthru
      _
    %239 = sfence
    %240 = vsyncpa [#allocation6], 1
    %241 = vsyncpa [#allocation9], 1
    %242 = vsyncpa [#allocation12], 1
    %243 = vsyncpa [#allocation7], 1

</llo_original>
